<compile_context>
chip_gen: v7x
topology: tpu7x:2x2x1
jax: 0.10.0
libtpu: 0.0.40
codegen_flags: <defaults>
</compile_context>

<pallas_src>
import functools

import jax
import jax.numpy as jnp
from jax.experimental import pallas as pl
from jax.experimental.pallas import tpu as pltpu


_MiB = 1024 * 1024
# Prefer shrinking the row tile over raising the scoped-VMEM limit past this.
_TM_VMEM_BUDGET = 28 * _MiB
# Never request more scoped VMEM than this (v7x physical VMEM is 64 MiB).
_VMEM_REQUEST_CAP = 48 * _MiB


def _round_up(v, m):
    return (v + m - 1) // m * m


def _gated_attn_kernel(x_ref, wab_ref, bab_ref, wc_ref, bc_ref, a_out_ref, *,
                       d, compute_dtype):
    x = x_ref[...]                                          # (TM, L)
    if compute_dtype is not None:
        # In-kernel cast: keeps the bf16 MXU fast path without materializing a
        # bf16 copy of x in HBM.
        x = x.astype(compute_dtype)

    # Fused attention_a / attention_b: one MXU pass over the x tile, f32 acc.
    ab = (jnp.dot(x, wab_ref[...], preferred_element_type=jnp.float32)
          + bab_ref[...].astype(jnp.float32))               # (TM, 2D)
    a = jnp.tanh(ab[:, :d])
    b = jax.nn.sigmoid(ab[:, d:])

    # Gating + attention_c: Linear(D, Cp).  Cp is pre-padded to a multiple of
    # 128 lanes so the store below is a full-width, unmasked vector store.
    gated = (a * b).astype(wc_ref.dtype)
    A = (jnp.dot(gated, wc_ref[...], preferred_element_type=jnp.float32)
         + bc_ref[...].astype(jnp.float32))
    a_out_ref[...] = A.astype(a_out_ref.dtype)


def _vmem_estimate(tm, L, D, Cp, x_isz, w_isz, out_isz, casts_x):
    """Rough per-step VMEM footprint: double-buffered blocks + live f32 temps."""
    two_d = 2 * D
    buffered_in = 2 * (tm * L * x_isz            # x tile
                       + L * two_d * w_isz       # [Wa | Wb]
                       + two_d * w_isz           # [ba | bb]
                       + D * Cp * w_isz          # Wc (lane padded)
                       + Cp * w_isz)             # bc (lane padded)
    buffered_out = 2 * tm * Cp * out_isz         # padded A blocks
    # Live intermediates: ab (tm,2D) f32, a/b (tm,D) f32 each, gated (tm,D)
    # in the weight dtype, A (tm,Cp) f32.
    temps = 4 * tm * (two_d + 2 * D + Cp) + tm * D * w_isz
    if casts_x:
        temps += tm * L * 2                      # bf16 copy of the x tile
    return buffered_in + buffered_out + temps


def _pick_tm(requested_tm, N, L, D, Cp, x_isz, w_isz, out_isz, casts_x):
    tm = max(8, _round_up(min(requested_tm, _round_up(N, 8)), 8))
    # Keep both v7x TensorCores busy: at least two grid steps when N allows it.
    if N > 8 and pl.cdiv(N, tm) < 2:
        tm = max(8, _round_up(pl.cdiv(N, 2), 8))
    # Prefer shrinking the tile over raising the scoped-VMEM limit (v7x 64 MiB).
    while tm > 128 and _vmem_estimate(tm, L, D, Cp, x_isz, w_isz, out_isz,
                                      casts_x) > _TM_VMEM_BUDGET:
        tm = max(128, _round_up(tm // 2, 8))
    return tm


@functools.partial(jax.jit, static_argnames=("tm", "compute_dtype", "out_dtype"))
def _attn_scores(x, wa, ba, wb, bb, wc, bc, *, tm, compute_dtype, out_dtype):
    """A = attention_c(tanh(x Wa + ba) * sigmoid(x Wb + bb)); shape (N, C)."""
    N, L = x.shape
    D = wa.shape[1]
    C = wc.shape[1]
    out_dtype = x.dtype if out_dtype is None else out_dtype

    # Fuse attention_a / attention_b params.  Pre-casting these (tiny) tensors
    # in the wrapper is cheap; x itself is cast inside the kernel instead of
    # taking an extra HBM round trip.
    wab = jnp.concatenate([wa, wb], axis=1)                  # (L, 2D)
    bab = jnp.concatenate([ba, bb], axis=1)                  # (1, 2D)
    if compute_dtype is not None:
        wab = wab.astype(compute_dtype)
        bab = bab.astype(compute_dtype)
        wc = wc.astype(compute_dtype)
        bc = bc.astype(compute_dtype)

    # Pad the class dim to a full 128-lane register -> lane-dense A stores.
    Cp = _round_up(max(C, 128), 128)
    wc_p = jnp.pad(wc, ((0, 0), (0, Cp - C))) if Cp != C else wc
    bc_p = jnp.pad(bc, ((0, 0), (0, Cp - C))) if Cp != C else bc

    x_isz = jnp.dtype(x.dtype).itemsize
    w_isz = jnp.dtype(wab.dtype).itemsize
    out_isz = jnp.dtype(out_dtype).itemsize
    casts_x = (compute_dtype is not None
               and jnp.dtype(x.dtype) != jnp.dtype(compute_dtype))

    tm = _pick_tm(tm, N, L, D, Cp, x_isz, w_isz, out_isz, casts_x)
    # No jnp.pad of x for ragged N: the tail block is partial and Pallas masks
    # its edge load/store (garbage tail rows never reach HBM).
    n_tiles = pl.cdiv(N, tm)

    vmem_est = _vmem_estimate(tm, L, D, Cp, x_isz, w_isz, out_isz, casts_x)
    compiler_kwargs = dict(dimension_semantics=("parallel",))
    if vmem_est > 16 * _MiB:  # v5e's default scoped VMEM is only 16 MiB
        compiler_kwargs["vmem_limit_bytes"] = int(
            min(_VMEM_REQUEST_CAP, max(32 * _MiB, vmem_est * 5 // 4)))

    full = lambda i: (0, 0)  # replicated (whole-array) parameter blocks
    # NOTE: the parameter blocks have constant index_maps, so single-buffering
    # them (pipeline_mode=pl.Buffered(1)) would free ~half their VMEM; kept at
    # the default double-buffering here for portability across Pallas versions.

    kernel = functools.partial(_gated_attn_kernel, d=D,
                               compute_dtype=compute_dtype)

    A_padded = pl.pallas_call(
        kernel,
        out_shape=jax.ShapeDtypeStruct((N, Cp), out_dtype),
        grid_spec=pltpu.PrefetchScalarGridSpec(
            num_scalar_prefetch=0,
            grid=(n_tiles,),
            in_specs=[
                pl.BlockSpec((tm, L), lambda i: (i, 0)),     # x tile
                pl.BlockSpec((L, 2 * D), full),              # [Wa | Wb]
                pl.BlockSpec((1, 2 * D), full),              # [ba | bb]
                pl.BlockSpec((D, Cp), full),                 # Wc (lane-padded)
                pl.BlockSpec((1, Cp), full),                 # bc (lane-padded)
            ],
            out_specs=pl.BlockSpec((tm, Cp), lambda i: (i, 0)),
        ),
        compiler_params=pltpu.CompilerParams(**compiler_kwargs),
    )(x, wab, bab, wc_p, bc_p)

    # Only the lane padding needs stripping (row padding is gone).  For
    # C << 128 this re-reads the padded scores once; pass out_dtype=bf16 to
    # halve that pass, or consume the lane-padded scores directly downstream.
    return A_padded if Cp == C else A_padded[:, :C]


def attn_net_gated(x, wa, ba, wb, bb, wc, bc, *, tm=512, compute_dtype=None,
                   out_dtype=None):
    """Mirrors Attn_Net_Gated.forward: returns (A, x).

    x: (N, L); wa/wb: (L, D); ba/bb: (1, D); wc: (D, C); bc: (1, C).

    compute_dtype (e.g. jnp.bfloat16) selects the MXU input dtype on all TPU
    generations (including v5e, whose bf16 MXU path is ~3-4x its f32 path);
    activations and accumulation remain f32 inside the kernel.  x is returned
    directly from Python (never copied through the kernel or recast in HBM).
    """
    A = _attn_scores(x, wa, ba, wb, bb, wc, bc, tm=tm,
                     compute_dtype=compute_dtype, out_dtype=out_dtype)
    return A, x


def init_params(key, L, D, n_classes, dtype=jnp.float32):
    """Deterministic init mimicking nn.Linear default (uniform +-1/sqrt(fan_in))."""
    k = jax.random.split(key, 6)
    sL = 1.0 / jnp.sqrt(L)
    sD = 1.0 / jnp.sqrt(D)
    wa = jax.random.uniform(k[0], (L, D), dtype, -sL, sL)
    ba = jax.random.uniform(k[1], (1, D), dtype, -sL, sL)
    wb = jax.random.uniform(k[2], (L, D), dtype, -sL, sL)
    bb = jax.random.uniform(k[3], (1, D), dtype, -sL, sL)
    wc = jax.random.uniform(k[4], (D, n_classes), dtype, -sD, sD)
    bc = jax.random.uniform(k[5], (1, n_classes), dtype, -sD, sD)
    return wa, ba, wb, bb, wc, bc


def reference(x, wa, ba, wb, bb, wc, bc):
    a = jnp.tanh(x @ wa + ba)
    b = jax.nn.sigmoid(x @ wb + bb)
    A = (a * b) @ wc + bc
    return A, x


if __name__ == "__main__":
    # Small shapes consistent with the module (defaults L=1024, D=256, scaled
    # down; D kept a multiple of 128 so the fused [Wa|Wb] split stays
    # lane-tile aligned).  N is deliberately NOT a tile multiple to exercise
    # the partial tail block (no jnp.pad of x anymore).
    # TODO(synk): dropout branch of the module (p=0.25) is not implemented;
    # the default (dropout=False) forward has none.
    N, L, D, n_classes = 200, 256, 128, 1

    key = jax.random.PRNGKey(0)
    kx, kp = jax.random.split(key)
    x = jax.random.normal(kx, (N, L), jnp.float32)
    params = init_params(kp, L, D, n_classes)

    # f32 path (tm heuristic picks 2 tiles of 104/96 rows for N=200).
    A, x_out = attn_net_gated(x, *params)
    A = jax.block_until_ready(A)
    x_out = jax.block_until_ready(x_out)

    A_ref, x_ref_out = reference(x, *params)
    assert A.shape == (N, n_classes)
    assert x_out.shape == (N, L)
    assert jnp.allclose(A, A_ref, atol=2e-5, rtol=2e-5)
    assert jnp.allclose(x_out, x_ref_out)

    # bf16 MXU streaming path (x cast inside the kernel; f32 accumulation).
    A_bf16, _ = attn_net_gated(x, *params, compute_dtype=jnp.bfloat16)
    A_bf16 = jax.block_until_ready(A_bf16)
    assert A_bf16.shape == (N, n_classes)
    assert jnp.allclose(A_bf16, A_ref, atol=5e-2, rtol=5e-2)

    print("KERNEL_OK")
</pallas_src>

<mosaic_0001>
module attributes {stable_mosaic.version = 11 : i64} {
  func.func @_gated_attn_kernel(%arg0: i32, %arg1: memref<104x256xf32, #tpu.memory_space<vmem>>, %arg2: memref<256x256xf32, #tpu.memory_space<vmem>>, %arg3: memref<1x256xf32, #tpu.memory_space<vmem>>, %arg4: memref<128x128xf32, #tpu.memory_space<vmem>>, %arg5: memref<1x128xf32, #tpu.memory_space<vmem>>, %arg6: memref<104x128xf32, #tpu.memory_space<vmem>>) attributes {dimension_semantics = [#tpu.dimension_semantics<parallel>], iteration_bounds = array<i64: 2>, scalar_prefetch = 0 : i64, scratch_operands = 0 : i64, tpu.core_type = #tpu.core_type<tc>, window_params = [{transform_indices = @transform_0, window_bounds = array<i64: 104, 256>}, {pipeline_mode = #tpu.pipeline_mode<synchronous>, transform_indices = @transform_1, window_bounds = array<i64: 256, 256>}, {pipeline_mode = #tpu.pipeline_mode<synchronous>, transform_indices = @transform_2, window_bounds = array<i64: 1, 256>}, {pipeline_mode = #tpu.pipeline_mode<synchronous>, transform_indices = @transform_3, window_bounds = array<i64: 128, 128>}, {pipeline_mode = #tpu.pipeline_mode<synchronous>, transform_indices = @transform_4, window_bounds = array<i64: 1, 128>}, {transform_indices = @transform_5, window_bounds = array<i64: 104, 128>}]} {
    %c0 = arith.constant 0 : index
    %c0_0 = arith.constant 0 : index
    %0 = vector.load %arg1[%c0, %c0_0] : memref<104x256xf32, #tpu.memory_space<vmem>>, vector<104x256xf32>
    %c0_1 = arith.constant 0 : index
    %c0_2 = arith.constant 0 : index
    %1 = vector.load %arg2[%c0_1, %c0_2] : memref<256x256xf32, #tpu.memory_space<vmem>>, vector<256x256xf32>
    %cst = arith.constant dense<0.000000e+00> : vector<104x256xf32>
    %2 = tpu.matmul %0, %1, %cst {dimension_numbers = #tpu.dot_dimension_numbers<[1], [0], [0], [1], [0, 0, 1, 1], [], []>} : vector<104x256xf32>, vector<256x256xf32>, vector<104x256xf32> -> vector<104x256xf32>
    %c0_3 = arith.constant 0 : index
    %c0_4 = arith.constant 0 : index
    %3 = vector.load %arg3[%c0_3, %c0_4] : memref<1x256xf32, #tpu.memory_space<vmem>>, vector<1x256xf32>
    %4 = vector.broadcast %3 : vector<1x256xf32> to vector<104x256xf32>
    %5 = arith.addf %2, %4 : vector<104x256xf32>
    %6 = vector.extract_strided_slice %5 {offsets = [0, 0], sizes = [104, 128], strides = [1, 1]} : vector<104x256xf32> to vector<104x128xf32>
    %7 = math.tanh %6 : vector<104x128xf32>
    %8 = vector.extract_strided_slice %5 {offsets = [0, 128], sizes = [104, 128], strides = [1, 1]} : vector<104x256xf32> to vector<104x128xf32>
    %9 = arith.negf %8 : vector<104x128xf32>
    %10 = math.exp %9 : vector<104x128xf32>
    %cst_5 = arith.constant 1.000000e+00 : f32
    %11 = vector.broadcast %cst_5 : f32 to vector<104x128xf32>
    %12 = arith.addf %11, %10 : vector<104x128xf32>
    %13 = arith.divf %11, %12 : vector<104x128xf32>
    %14 = arith.mulf %7, %13 : vector<104x128xf32>
    %c0_6 = arith.constant 0 : index
    %c0_7 = arith.constant 0 : index
    %15 = vector.load %arg4[%c0_6, %c0_7] : memref<128x128xf32, #tpu.memory_space<vmem>>, vector<128x128xf32>
    %cst_8 = arith.constant dense<0.000000e+00> : vector<104x128xf32>
    %16 = tpu.matmul %14, %15, %cst_8 {dimension_numbers = #tpu.dot_dimension_numbers<[1], [0], [0], [1], [0, 0, 1, 1], [], []>} : vector<104x128xf32>, vector<128x128xf32>, vector<104x128xf32> -> vector<104x128xf32>
    %c0_9 = arith.constant 0 : index
    %c0_10 = arith.constant 0 : index
    %17 = vector.load %arg5[%c0_9, %c0_10] : memref<1x128xf32, #tpu.memory_space<vmem>>, vector<1x128xf32>
    %18 = vector.broadcast %17 : vector<1x128xf32> to vector<104x128xf32>
    %19 = arith.addf %16, %18 : vector<104x128xf32>
    %c0_11 = arith.constant 0 : index
    %c0_12 = arith.constant 0 : index
    %20 = vector.load %arg6[%c0_11, %c0_12] : memref<104x128xf32, #tpu.memory_space<vmem>>, vector<104x128xf32>
    tpu.vector_store %arg6[%c0_11, %c0_12], %19 {strides = array<i32>} : memref<104x128xf32, #tpu.memory_space<vmem>>, vector<104x128xf32>,
    return
  }
  func.func @transform_0(%arg0: i32) -> (i32, i32) {
    %c0_i32 = arith.constant 0 : i32
    %c0_i32_0 = arith.constant 0 : i32
    return %arg0, %c0_i32 : i32, i32
  }
  func.func @transform_1(%arg0: i32) -> (i32, i32) {
    %c0_i32 = arith.constant 0 : i32
    %c0_i32_0 = arith.constant 0 : i32
    %c0_i32_1 = arith.constant 0 : i32
    return %c0_i32, %c0_i32_0 : i32, i32
  }
  func.func @transform_2(%arg0: i32) -> (i32, i32) {
    %c0_i32 = arith.constant 0 : i32
    %c0_i32_0 = arith.constant 0 : i32
    %c0_i32_1 = arith.constant 0 : i32
    return %c0_i32, %c0_i32_0 : i32, i32
  }
  func.func @transform_3(%arg0: i32) -> (i32, i32) {
    %c0_i32 = arith.constant 0 : i32
    %c0_i32_0 = arith.constant 0 : i32
    %c0_i32_1 = arith.constant 0 : i32
    return %c0_i32, %c0_i32_0 : i32, i32
  }
  func.func @transform_4(%arg0: i32) -> (i32, i32) {
    %c0_i32 = arith.constant 0 : i32
    %c0_i32_0 = arith.constant 0 : i32
    %c0_i32_1 = arith.constant 0 : i32
    return %c0_i32, %c0_i32_0 : i32, i32
  }
  func.func @transform_5(%arg0: i32) -> (i32, i32) {
    %c0_i32 = arith.constant 0 : i32
    %c0_i32_0 = arith.constant 0 : i32
    return %arg0, %c0_i32 : i32, i32
  }
}

</mosaic_0001>

<llo_original>
// kernel: _attn_scores.1
$region0: #{_attn_scores.1}
  #allocation0 [shape = 'u32[]', space=smem, size = 0x4, offset = 0x4, fixed_abs, tag = 'smem constant byte address 0x4 - core index']
  #allocation1 [shape = 'u32[144,128]{1,0:T(1,128)}', space=vmem, size = 0x12000, scoped, tag = 'internal scratch']
  %s0 = inlined_call_operand.vmem [shape: f32[200,256], index: 0, kind: input, shape index: {}]
  %s1 = inlined_call_operand.vmem [shape: f32[256,256], index: 1, kind: input, shape index: {}]
  %s2 = inlined_call_operand.vmem [shape: f32[1,256], index: 2, kind: input, shape index: {}]
  %s3 = inlined_call_operand.vmem [shape: f32[128,128], index: 3, kind: input, shape index: {}]
  %s4 = inlined_call_operand.vmem [shape: f32[1,128], index: 4, kind: input, shape index: {}]
  %s5 = inlined_call_operand.vmem [shape: f32[200,128], index: 5, kind: output, shape index: {}]
  %s6 = sld [smem:[#allocation0]]
  $region101: #{_attn_scores.1} parent=0
    _
  %s8 = ssub.s32 1, %s6
  %s9 = scalar_select 0, %s8, %s6
  $region1: #{_attn_scores.1} parent=0
    #allocation2 [shape = 'u8[106496]{0}', space=vmem, size = 0x1a000, scoped, tag = 'output window, operand 0']
    loop: start=0, step=1, limit=4
    $region2: #{_attn_scores.1} parent=1 // loop_pre_header
      _
    $region3: #{_attn_scores.1} parent=1 // loop_header
      %s11 = sphi 0, %s15
      %p12 = scmp.ge.s32.totalorder %s11, 4
      %s21 = sphi 0, %s23
      %s24 = sphi 0, %s21
      %s25 = sphi 0, %s24
      %s41 = sphi 0, %s25
      %s45 = sphi 0, %s45
      %s47 = sphi 0, %s45
      %s48 = sphi 0, %s47
      %s62 = sphi 0, %s48
      %s66 = sphi 0, %s66
      %s68 = sphi 0, %s66
      %s69 = sphi 0, %s68
      %s83 = sphi 0, %s69
      %s87 = sphi 0, %s87
      %s89 = sphi 0, %s87
      %s90 = sphi 0, %s89
      %s104 = sphi 0, %s90
      %s108 = sphi 0, %s108
      %s110 = sphi 0, %s108
      %s111 = sphi 0, %s110
      %s125 = sphi 0, %s111
      %s131 = sphi 0, %s133
      %s134 = sphi 0, %s131
      %s135 = sphi 0, %s134
      %s151 = sphi 0, %s135
    $region4: #{_attn_scores.1} parent=1 // loop_header_branch
      %14 = sbr.rel (%p12) target = $region8
    $region5: #{_attn_scores.1} parent=1 // loop_body
      %s16 = ssub.s32 %s11, 1
      %s17 = ssub.s32 %s11, 2
      %s18 = sadd.s32 %s11, 1
      %s19 = ssub.s32 %s11, %s18
      %p20 = scmp.eq.s32.totalorder %s19, 0
      %s22 = sadd.s32 %s21, 1
      %s23 = scalar_select %p20, %s21, %s22
      %p26 = pneg %p20
      %p27 = scmp.eq.s32.totalorder %s11, 1
      %p28 = por %p26, %p27
      %p29 = scmp.ne.s32.totalorder %s21, %s24
      %p30 = scmp.eq.s32.totalorder %s11, 0
      %p31 = por %p29, %p30
      %p32 = scmp.ne.s32.totalorder %s21, %s24
      %p33 = scmp.eq.s32.totalorder %s16, 1
      %p34 = por %p32, %p33
      %p35 = scmp.ne.s32.totalorder %s24, %s25
      %p36 = scmp.eq.s32.totalorder %s16, 0
      %p37 = por %p35, %p36
      %p38 = scmp.ne.s32.totalorder %s24, %s25
      %p39 = scmp.eq.s32.totalorder %s17, 1
      %p40 = por %p38, %p39
      %p42 = scmp.ne.s32.totalorder %s25, %s41
      %p43 = scmp.eq.s32.totalorder %s17, 0
      %p44 = por %p42, %p43
      %s46 = sadd.s32 %s45, 1
      %p49 = scmp.eq.s32.totalorder %s11, 1
      %p50 = scmp.ne.s32.totalorder %s45, %s47
      %p51 = scmp.eq.s32.totalorder %s11, 0
      %p52 = por %p50, %p51
      %p53 = scmp.ne.s32.totalorder %s45, %s47
      %p54 = scmp.eq.s32.totalorder %s16, 1
      %p55 = por %p53, %p54
      %p56 = scmp.ne.s32.totalorder %s47, %s48
      %p57 = scmp.eq.s32.totalorder %s16, 0
      %p58 = por %p56, %p57
      %p59 = scmp.ne.s32.totalorder %s47, %s48
      %p60 = scmp.eq.s32.totalorder %s17, 1
      %p61 = por %p59, %p60
      %p63 = scmp.ne.s32.totalorder %s48, %s62
      %p64 = scmp.eq.s32.totalorder %s17, 0
      %p65 = por %p63, %p64
      %s67 = sadd.s32 %s66, 1
      %p70 = scmp.eq.s32.totalorder %s11, 1
      %p71 = scmp.ne.s32.totalorder %s66, %s68
      %p72 = scmp.eq.s32.totalorder %s11, 0
      %p73 = por %p71, %p72
      %p74 = scmp.ne.s32.totalorder %s66, %s68
      %p75 = scmp.eq.s32.totalorder %s16, 1
      %p76 = por %p74, %p75
      %p77 = scmp.ne.s32.totalorder %s68, %s69
      %p78 = scmp.eq.s32.totalorder %s16, 0
      %p79 = por %p77, %p78
      %p80 = scmp.ne.s32.totalorder %s68, %s69
      %p81 = scmp.eq.s32.totalorder %s17, 1
      %p82 = por %p80, %p81
      %p84 = scmp.ne.s32.totalorder %s69, %s83
      %p85 = scmp.eq.s32.totalorder %s17, 0
      %p86 = por %p84, %p85
      %s88 = sadd.s32 %s87, 1
      %p91 = scmp.eq.s32.totalorder %s11, 1
      %p92 = scmp.ne.s32.totalorder %s87, %s89
      %p93 = scmp.eq.s32.totalorder %s11, 0
      %p94 = por %p92, %p93
      %p95 = scmp.ne.s32.totalorder %s87, %s89
      %p96 = scmp.eq.s32.totalorder %s16, 1
      %p97 = por %p95, %p96
      %p98 = scmp.ne.s32.totalorder %s89, %s90
      %p99 = scmp.eq.s32.totalorder %s16, 0
      %p100 = por %p98, %p99
      %p101 = scmp.ne.s32.totalorder %s89, %s90
      %p102 = scmp.eq.s32.totalorder %s17, 1
      %p103 = por %p101, %p102
      %p105 = scmp.ne.s32.totalorder %s90, %s104
      %p106 = scmp.eq.s32.totalorder %s17, 0
      %p107 = por %p105, %p106
      %s109 = sadd.s32 %s108, 1
      %p112 = scmp.eq.s32.totalorder %s11, 1
      %p113 = scmp.ne.s32.totalorder %s108, %s110
      %p114 = scmp.eq.s32.totalorder %s11, 0
      %p115 = por %p113, %p114
      %p116 = scmp.ne.s32.totalorder %s108, %s110
      %p117 = scmp.eq.s32.totalorder %s16, 1
      %p118 = por %p116, %p117
      %p119 = scmp.ne.s32.totalorder %s110, %s111
      %p120 = scmp.eq.s32.totalorder %s16, 0
      %p121 = por %p119, %p120
      %p122 = scmp.ne.s32.totalorder %s110, %s111
      %p123 = scmp.eq.s32.totalorder %s17, 1
      %p124 = por %p122, %p123
      %p126 = scmp.ne.s32.totalorder %s111, %s125
      %p127 = scmp.eq.s32.totalorder %s17, 0
      %p128 = por %p126, %p127
      %s129 = ssub.s32 %s11, %s18
      %p130 = scmp.eq.s32.totalorder %s129, 0
      %s132 = sadd.s32 %s131, 1
      %s133 = scalar_select %p130, %s131, %s132
      %p136 = pneg %p130
      %p137 = scmp.eq.s32.totalorder %s11, 1
      %p138 = por %p136, %p137
      %p139 = scmp.ne.s32.totalorder %s131, %s134
      %p140 = scmp.eq.s32.totalorder %s11, 0
      %p141 = por %p139, %p140
      %p142 = scmp.ne.s32.totalorder %s131, %s134
      %p143 = scmp.eq.s32.totalorder %s16, 1
      %p144 = por %p142, %p143
      %p145 = scmp.ne.s32.totalorder %s134, %s135
      %p146 = scmp.eq.s32.totalorder %s16, 0
      %p147 = por %p145, %p146
      %p148 = scmp.ne.s32.totalorder %s134, %s135
      %p149 = scmp.eq.s32.totalorder %s17, 1
      %p150 = por %p148, %p149
      %p152 = scmp.ne.s32.totalorder %s135, %s151
      %p153 = scmp.eq.s32.totalorder %s17, 0
      %p154 = por %p152, %p153
      %p155 = scmp.le.s32.totalorder 1, %s11
      %p156 = scmp.lt.s32.totalorder %s11, 3
      %p157 = pnand %p155, %p156
      %p158 = pneg %p157
      // Predicated region
      $region9: #{_attn_scores.1} parent=5 // pred_check
        _
      $region10: #{_attn_scores.1} parent=5 // pred_check_branch
        %160 = sbr.rel (%p157) target = $region12
      $region11: #{_attn_scores.1} parent=5 // pred_region
        %s161 = ssub.s32 %s11, 1
        // Predicated region
        $region13: #{_attn_scores.1} parent=11 // pred_check
          %p162 = pneg %p58
        $region14: #{_attn_scores.1} parent=11 // pred_check_branch
          %164 = sbr.rel (%p162) target = $region16
        $region15: #{_attn_scores.1} parent=11 // pred_region
          _
        $region16: #{_attn_scores.1} parent=11 // pred_fallthru
          _
        // Predicated region
        $region17: #{_attn_scores.1} parent=11 // pred_check
          %p165 = pneg %p79
        $region18: #{_attn_scores.1} parent=11 // pred_check_branch
          %167 = sbr.rel (%p165) target = $region20
        $region19: #{_attn_scores.1} parent=11 // pred_region
          _
        $region20: #{_attn_scores.1} parent=11 // pred_fallthru
          _
        // Predicated region
        $region21: #{_attn_scores.1} parent=11 // pred_check
          %p168 = pneg %p100
        $region22: #{_attn_scores.1} parent=11 // pred_check_branch
          %170 = sbr.rel (%p168) target = $region24
        $region23: #{_attn_scores.1} parent=11 // pred_region
          _
        $region24: #{_attn_scores.1} parent=11 // pred_fallthru
          _
        // Predicated region
        $region25: #{_attn_scores.1} parent=11 // pred_check
          %p171 = pneg %p121
        $region26: #{_attn_scores.1} parent=11 // pred_check_branch
          %173 = sbr.rel (%p171) target = $region28
        $region27: #{_attn_scores.1} parent=11 // pred_region
          _
        $region28: #{_attn_scores.1} parent=11 // pred_fallthru
          _
      $region12: #{_attn_scores.1} parent=5 // pred_fallthru
        _
      %p174 = scmp.lt.s32.totalorder %s11, 2
      // Predicated region
      $region29: #{_attn_scores.1} parent=5 // pred_check
        %p175 = pneg %p174
      $region30: #{_attn_scores.1} parent=5 // pred_check_branch
        %177 = sbr.rel (%p175) target = $region32
      $region31: #{_attn_scores.1} parent=5 // pred_region
        // Predicated region
        $region33: #{_attn_scores.1} parent=31 // pred_check
          %p178 = pneg %p31
        $region34: #{_attn_scores.1} parent=31 // pred_check_branch
          %180 = sbr.rel (%p178) target = $region36
        $region35: #{_attn_scores.1} parent=31 // pred_region
          %s181 = smul.u32 13, %s11
          %s182 = ssub.s32 25, %s181
          %p183 = scmp.lt.s32.totalorder %s182, 13
          %s184 = scalar_select %p183, %s182, 13
          %s185 = smul.u32 128, %s184
          %s186 = smul.u32 %s185, 2
          %p187 = scmp.lt.s32.totalorder %s181, 24
          %s188 = scalar_select %p187, %s181, 24
          %s189 = smul.addr %s188, 2
          %s190 = smul.addr %s189, 8
          %s191 = scalar_lea.vmem %s0, %s190
          %s192 = smul.u32 13, %s11
          %s193 = ssub.s32 25, %s192
          %p194 = scmp.lt.s32.totalorder %s193, 13
          %s195 = scalar_select %p194, %s193, 13
          %s196 = smul.u32 128, %s195
          %s197 = smul.u32 %s196, 2
        $region36: #{_attn_scores.1} parent=31 // pred_fallthru
          _
      $region32: #{_attn_scores.1} parent=5 // pred_fallthru
        _
      %p198 = scmp.le.s32.totalorder 1, %s11
      %p199 = scmp.lt.s32.totalorder %s11, 3
      %p200 = pnand %p198, %p199
      %p201 = pneg %p200
      // Predicated region
      $region37: #{_attn_scores.1} parent=5 // pred_check
        _
      $region38: #{_attn_scores.1} parent=5 // pred_check_branch
        %203 = sbr.rel (%p200) target = $region40
      $region39: #{_attn_scores.1} parent=5 // pred_region
        %s204 = ssub.s32 %s11, 1
        %s205 = smul.u32 13, %s16
        %s206 = ssub.s32 25, %s205
        %p207 = scmp.lt.s32.totalorder %s206, 13
        %s208 = scalar_select %p207, %s206, 13
        %s209 = smul.u32 128, %s208
        %s210 = smul.u32 %s209, 2
        %p211 = scmp.lt.s32.totalorder %s205, 24
        %s212 = scalar_select %p211, %s205, 24
        %s213 = smul.addr %s212, 2
        %s214 = smul.addr %s213, 8
        %s215 = scalar_lea.vmem %s0, %s214
        %p216 = pneg %p37
        %p217 = pneg %p34
        %p218 = pneg %p58
        %p219 = pneg %p55
        %p220 = pneg %p79
        %p221 = pneg %p76
        %p222 = pneg %p100
        %p223 = pneg %p97
        %p224 = pneg %p121
        %p225 = pneg %p118
        %p226 = pneg %p147
        %p227 = pneg %p144
        %s228 = sand.u32 %s134, 1
        %s229 = sand.u32 %s134, 1
        %s230 = smul.addr %s229, 104
        %s231 = scalar_lea.vmem [#allocation2], %s230
        %s232 = smul.u32 13, %s16
        %s233 = ssub.s32 25, %s232
        %p234 = scmp.lt.s32.totalorder %s233, 13
        %s235 = scalar_select %p234, %s233, 13
        %s236 = smul.u32 128, %s235
        %s237 = smul.u32 %s236, 2
        %p238 = scmp.lt.s32.totalorder %s232, 24
        %s239 = scalar_select %p238, %s232, 24
        %s240 = smul.addr %s239, 2
        %s241 = smul.addr %s240, 8
        %s242 = scalar_lea.vmem %s0, %s241
        %s243 = smul.u32 13, %s16
        %s244 = ssub.s32 25, %s243
        %p245 = scmp.lt.s32.totalorder %s244, 13
        %s246 = scalar_select %p245, %s244, 13
        %s247 = smul.u32 128, %s246
        %s248 = smul.u32 %s247, 2
        %s249 = smul.u32 13, %s16
        %s250 = ssub.s32 25, %s249
        %p251 = scmp.lt.s32.totalorder %s250, 13
        %s252 = scalar_select %p251, %s250, 13
        %s253 = smul.u32 128, %s252
        %v254 = vld [vmem:[%s242] sm:$0xff]
        %v255 = vld [vmem:[%s242 + $0x8] sm:$0xff]
        %v256 = vld [vmem:[%s242 + $0x10] sm:$0xff]
        %v257 = vld [vmem:[%s242 + $0x18] sm:$0xff]
        %v258 = vld [vmem:[%s242 + $0x20] sm:$0xff]
        %v259 = vld [vmem:[%s242 + $0x28] sm:$0xff]
        %v260 = vld [vmem:[%s242 + $0x30] sm:$0xff]
        %v261 = vld [vmem:[%s242 + $0x38] sm:$0xff]
        %v262 = vld [vmem:[%s242 + $0x40] sm:$0xff]
        %v263 = vld [vmem:[%s242 + $0x48] sm:$0xff]
        %v264 = vld [vmem:[%s242 + $0x50] sm:$0xff]
        %v265 = vld [vmem:[%s242 + $0x58] sm:$0xff]
        %v266 = vld [vmem:[%s242 + $0x60] sm:$0xff]
        %v267 = vld [vmem:[%s242 + $0x68] sm:$0xff]
        %v268 = vld [vmem:[%s242 + $0x70] sm:$0xff]
        %v269 = vld [vmem:[%s242 + $0x78] sm:$0xff]
        %v270 = vld [vmem:[%s242 + $0x80] sm:$0xff]
        %v271 = vld [vmem:[%s242 + $0x88] sm:$0xff]
        %v272 = vld [vmem:[%s242 + $0x90] sm:$0xff]
        %v273 = vld [vmem:[%s242 + $0x98] sm:$0xff]
        %v274 = vld [vmem:[%s242 + $0xa0] sm:$0xff]
        %v275 = vld [vmem:[%s242 + $0xa8] sm:$0xff]
        %v276 = vld [vmem:[%s242 + $0xb0] sm:$0xff]
        %v277 = vld [vmem:[%s242 + $0xb8] sm:$0xff]
        %v278 = vld [vmem:[%s242 + $0xc0] sm:$0xff]
        %v279 = vld [vmem:[%s242 + $0xc8] sm:$0xff]
        %v280 = vld [vmem:[%s1] sm:$0xff]
        %v281 = vld [vmem:[%s1 + $0x8] sm:$0xff]
        %v282 = vld [vmem:[%s1 + $0x10] sm:$0xff]
        %v283 = vld [vmem:[%s1 + $0x18] sm:$0xff]
        %v284 = vld [vmem:[%s1 + $0x20] sm:$0xff]
        %v285 = vld [vmem:[%s1 + $0x28] sm:$0xff]
        %v286 = vld [vmem:[%s1 + $0x30] sm:$0xff]
        %v287 = vld [vmem:[%s1 + $0x38] sm:$0xff]
        %v288 = vld [vmem:[%s1 + $0x40] sm:$0xff]
        %v289 = vld [vmem:[%s1 + $0x48] sm:$0xff]
        %v290 = vld [vmem:[%s1 + $0x50] sm:$0xff]
        %v291 = vld [vmem:[%s1 + $0x58] sm:$0xff]
        %v292 = vld [vmem:[%s1 + $0x60] sm:$0xff]
        %v293 = vld [vmem:[%s1 + $0x68] sm:$0xff]
        %v294 = vld [vmem:[%s1 + $0x70] sm:$0xff]
        %v295 = vld [vmem:[%s1 + $0x78] sm:$0xff]
        %v296 = vld [vmem:[%s1 + $0x80] sm:$0xff]
        %v297 = vld [vmem:[%s1 + $0x88] sm:$0xff]
        %v298 = vld [vmem:[%s1 + $0x90] sm:$0xff]
        %v299 = vld [vmem:[%s1 + $0x98] sm:$0xff]
        %v300 = vld [vmem:[%s1 + $0xa0] sm:$0xff]
        %v301 = vld [vmem:[%s1 + $0xa8] sm:$0xff]
        %v302 = vld [vmem:[%s1 + $0xb0] sm:$0xff]
        %v303 = vld [vmem:[%s1 + $0xb8] sm:$0xff]
        %v304 = vld [vmem:[%s1 + $0xc0] sm:$0xff]
        %v305 = vld [vmem:[%s1 + $0xc8] sm:$0xff]
        %v306 = vld [vmem:[%s1 + $0xd0] sm:$0xff]
        %v307 = vld [vmem:[%s1 + $0xd8] sm:$0xff]
        %v308 = vld [vmem:[%s1 + $0xe0] sm:$0xff]
        %v309 = vld [vmem:[%s1 + $0xe8] sm:$0xff]
        %v310 = vld [vmem:[%s1 + $0xf0] sm:$0xff]
        %v311 = vld [vmem:[%s1 + $0xf8] sm:$0xff]
        %v312 = vld [vmem:[%s1 + $0x100] sm:$0xff]
        %v313 = vld [vmem:[%s1 + $0x108] sm:$0xff]
        %v314 = vld [vmem:[%s1 + $0x110] sm:$0xff]
        %v315 = vld [vmem:[%s1 + $0x118] sm:$0xff]
        %v316 = vld [vmem:[%s1 + $0x120] sm:$0xff]
        %v317 = vld [vmem:[%s1 + $0x128] sm:$0xff]
        %v318 = vld [vmem:[%s1 + $0x130] sm:$0xff]
        %v319 = vld [vmem:[%s1 + $0x138] sm:$0xff]
        %v320 = vld [vmem:[%s1 + $0x140] sm:$0xff]
        %v321 = vld [vmem:[%s1 + $0x148] sm:$0xff]
        %v322 = vld [vmem:[%s1 + $0x150] sm:$0xff]
        %v323 = vld [vmem:[%s1 + $0x158] sm:$0xff]
        %v324 = vld [vmem:[%s1 + $0x160] sm:$0xff]
        %v325 = vld [vmem:[%s1 + $0x168] sm:$0xff]
        %v326 = vld [vmem:[%s1 + $0x170] sm:$0xff]
        %v327 = vld [vmem:[%s1 + $0x178] sm:$0xff]
        %v328 = vld [vmem:[%s1 + $0x180] sm:$0xff]
        %v329 = vld [vmem:[%s1 + $0x188] sm:$0xff]
        %v330 = vld [vmem:[%s1 + $0x190] sm:$0xff]
        %v331 = vld [vmem:[%s1 + $0x198] sm:$0xff]
        %v332 = vld [vmem:[%s1 + $0x1a0] sm:$0xff]
        %v333 = vld [vmem:[%s1 + $0x1a8] sm:$0xff]
        %v334 = vld [vmem:[%s1 + $0x1b0] sm:$0xff]
        %v335 = vld [vmem:[%s1 + $0x1b8] sm:$0xff]
        %v336 = vld [vmem:[%s1 + $0x1c0] sm:$0xff]
        %v337 = vld [vmem:[%s1 + $0x1c8] sm:$0xff]
        %v338 = vld [vmem:[%s1 + $0x1d0] sm:$0xff]
        %v339 = vld [vmem:[%s1 + $0x1d8] sm:$0xff]
        %v340 = vld [vmem:[%s1 + $0x1e0] sm:$0xff]
        %v341 = vld [vmem:[%s1 + $0x1e8] sm:$0xff]
        %v342 = vld [vmem:[%s1 + $0x1f0] sm:$0xff]
        %v343 = vld [vmem:[%s1 + $0x1f8] sm:$0xff]
        %v344 = vld [vmem:[%s2] sm:$0x3]
        %v346 = vlaneseq
        %v347 = vshrl.u32 %v346, 7
        %v348 = vsub.s32 0, %v347
        %v349 = vrot.slane %v344, %v348
        %v350 = vlaneseq
        %v351 = vshrl.u32 %v350, 7
        %v352 = vsub.s32 1, %v351
        %v353 = vrot.slane %v344, %v352
        %356 = vmatprep.subr.mxu0 %v281
        %357 = vmatpush1.msra.mxu0 %v280
        %358 = vmatprep.subr.mxu0 %v283
        %359 = vmatpush1.msra.mxu0 %v282
        %360 = vmatprep.subr.mxu0 %v285
        %361 = vmatpush1.msra.mxu0 %v284
        %362 = vmatprep.subr.mxu0 %v287
        %363 = vmatpush1.msra.mxu0 %v286
        %364 = vmatprep.subr.mxu0 %v289
        %365 = vmatpush1.msra.mxu0 %v288
        %366 = vmatprep.subr.mxu0 %v291
        %367 = vmatpush1.msra.mxu0 %v290
        %368 = vmatprep.subr.mxu0 %v293
        %369 = vmatpush1.msra.mxu0 %v292
        %370 = vmatprep.subr.mxu0 %v295
        %371 = vmatpush1.msra.mxu0 %v294
        %372 = vmatprep.subr.mxu0 %v297
        %373 = vmatpush1.msra.mxu0 %v296
        %374 = vmatprep.subr.mxu0 %v299
        %375 = vmatpush1.msra.mxu0 %v298
        %376 = vmatprep.subr.mxu0 %v301
        %377 = vmatpush1.msra.mxu0 %v300
        %378 = vmatprep.subr.mxu0 %v303
        %379 = vmatpush1.msra.mxu0 %v302
        %380 = vmatprep.subr.mxu0 %v305
        %381 = vmatpush1.msra.mxu0 %v304
        %382 = vmatprep.subr.mxu0 %v307
        %383 = vmatpush1.msra.mxu0 %v306
        %384 = vmatprep.subr.mxu0 %v309
        %385 = vmatpush1.msra.mxu0 %v308
        %386 = vmatprep.subr.mxu0 %v311
        %387 = vmatpush1.msra.mxu0 %v310
        %388 = vmatprep.subr.mxu0 %v313
        %389 = vmatpush1.msra.mxu0 %v312
        %390 = vmatprep.subr.mxu0 %v315
        %391 = vmatpush1.msra.mxu0 %v314
        %392 = vmatprep.subr.mxu0 %v317
        %393 = vmatpush1.msra.mxu0 %v316
        %394 = vmatprep.subr.mxu0 %v319
        %395 = vmatpush1.msra.mxu0 %v318
        %396 = vmatprep.subr.mxu0 %v321
        %397 = vmatpush1.msra.mxu0 %v320
        %398 = vmatprep.subr.mxu0 %v323
        %399 = vmatpush1.msra.mxu0 %v322
        %400 = vmatprep.subr.mxu0 %v325
        %401 = vmatpush1.msra.mxu0 %v324
        %402 = vmatprep.subr.mxu0 %v327
        %403 = vmatpush1.msra.mxu0 %v326
        %404 = vmatprep.subr.mxu0 %v329
        %405 = vmatpush1.msra.mxu0 %v328
        %406 = vmatprep.subr.mxu0 %v331
        %407 = vmatpush1.msra.mxu0 %v330
        %408 = vmatprep.subr.mxu0 %v333
        %409 = vmatpush1.msra.mxu0 %v332
        %410 = vmatprep.subr.mxu0 %v335
        %411 = vmatpush1.msra.mxu0 %v334
        %412 = vmatprep.subr.mxu0 %v337
        %413 = vmatpush1.msra.mxu0 %v336
        %414 = vmatprep.subr.mxu0 %v339
        %415 = vmatpush1.msra.mxu0 %v338
        %416 = vmatprep.subr.mxu0 %v341
        %417 = vmatpush1.msra.mxu0 %v340
        %418 = vmatprep.subr.mxu0 %v343
        %419 = vmatpush1.msra.mxu0 %v342
        %420 = vmatprep.mubr.f32.mxu0 %v255
        %421 = vmatmul.mubr.f32.gmra.mrb[0].mxu0 %v254
        %v422 = vpop.f32.mrb[0].mxu0
        %v423 = vadd.f32 %v349, %v422
        %v424 = vpop.f32.mrb[0].mxu0
        %v425 = vadd.f32 %v353, %v424
        %426 = vmatprep.mubr.f32.mxu0 %v257
        %427 = vmatmul.mubr.f32.gmra.mrb[0].mxu0 %v256
        %v428 = vpop.f32.mrb[0].mxu0
        %v429 = vadd.f32 %v349, %v428
        %v430 = vpop.f32.mrb[0].mxu0
        %v431 = vadd.f32 %v353, %v430
        %432 = vmatprep.mubr.f32.mxu0 %v259
        %433 = vmatmul.mubr.f32.gmra.mrb[0].mxu0 %v258
        %v434 = vpop.f32.mrb[0].mxu0
        %v435 = vadd.f32 %v349, %v434
        %v436 = vpop.f32.mrb[0].mxu0
        %v437 = vadd.f32 %v353, %v436
        %438 = vmatprep.mubr.f32.mxu0 %v261
        %439 = vmatmul.mubr.f32.gmra.mrb[0].mxu0 %v260
        %v440 = vpop.f32.mrb[0].mxu0
        %v441 = vadd.f32 %v349, %v440
        %v442 = vpop.f32.mrb[0].mxu0
        %v443 = vadd.f32 %v353, %v442
        %444 = vmatprep.mubr.f32.mxu0 %v263
        %445 = vmatmul.mubr.f32.gmra.mrb[0].mxu0 %v262
        %v446 = vpop.f32.mrb[0].mxu0
        %v447 = vadd.f32 %v349, %v446
        %v448 = vpop.f32.mrb[0].mxu0
        %v449 = vadd.f32 %v353, %v448
        %450 = vmatprep.mubr.f32.mxu0 %v265
        %451 = vmatmul.mubr.f32.gmra.mrb[0].mxu0 %v264
        %v452 = vpop.f32.mrb[0].mxu0
        %v453 = vadd.f32 %v349, %v452
        %v454 = vpop.f32.mrb[0].mxu0
        %v455 = vadd.f32 %v353, %v454
        %456 = vmatprep.mubr.f32.mxu0 %v267
        %457 = vmatmul.mubr.f32.gmra.mrb[0].mxu0 %v266
        %v458 = vpop.f32.mrb[0].mxu0
        %v459 = vadd.f32 %v349, %v458
        %v460 = vpop.f32.mrb[0].mxu0
        %v461 = vadd.f32 %v353, %v460
        %462 = vmatprep.mubr.f32.mxu0 %v269
        %463 = vmatmul.mubr.f32.gmra.mrb[0].mxu0 %v268
        %v464 = vpop.f32.mrb[0].mxu0
        %v465 = vadd.f32 %v349, %v464
        %v466 = vpop.f32.mrb[0].mxu0
        %v467 = vadd.f32 %v353, %v466
        %468 = vmatprep.mubr.f32.mxu0 %v271
        %469 = vmatmul.mubr.f32.gmra.mrb[0].mxu0 %v270
        %v470 = vpop.f32.mrb[0].mxu0
        %v471 = vadd.f32 %v349, %v470
        %v472 = vpop.f32.mrb[0].mxu0
        %v473 = vadd.f32 %v353, %v472
        %474 = vmatprep.mubr.f32.mxu0 %v273
        %475 = vmatmul.mubr.f32.gmra.mrb[0].mxu0 %v272
        %v476 = vpop.f32.mrb[0].mxu0
        %v477 = vadd.f32 %v349, %v476
        %v478 = vpop.f32.mrb[0].mxu0
        %v479 = vadd.f32 %v353, %v478
        %480 = vmatprep.mubr.f32.mxu0 %v275
        %481 = vmatmul.mubr.f32.gmra.mrb[0].mxu0 %v274
        %v482 = vpop.f32.mrb[0].mxu0
        %v483 = vadd.f32 %v349, %v482
        %v484 = vpop.f32.mrb[0].mxu0
        %v485 = vadd.f32 %v353, %v484
        %486 = vmatprep.mubr.f32.mxu0 %v277
        %487 = vmatmul.mubr.f32.gmra.mrb[0].mxu0 %v276
        %v488 = vpop.f32.mrb[0].mxu0
        %v489 = vadd.f32 %v349, %v488
        %v490 = vpop.f32.mrb[0].mxu0
        %v491 = vadd.f32 %v353, %v490
        %492 = vmatprep.mubr.f32.mxu0 %v279
        %493 = vmatmul.mubr.f32.gmra.mrb[0].mxu0 %v278
        %v494 = vpop.f32.mrb[0].mxu0
        %v495 = vadd.f32 %v349, %v494
        %v496 = vpop.f32.mrb[0].mxu0
        %v497 = vadd.f32 %v353, %v496
        %498 = vdwg.mxu0
        %v499 = vtanh.pop %v423
        %v500 = vtanh.pop %v429
        %v501 = vtanh.pop %v435
        %v502 = vtanh.pop %v441
        %v503 = vtanh.pop %v447
        %v504 = vtanh.pop %v453
        %v505 = vtanh.pop %v459
        %v506 = vtanh.pop %v465
        %v507 = vtanh.pop %v471
        %v508 = vtanh.pop %v477
        %v509 = vtanh.pop %v483
        %v510 = vtanh.pop %v489
        %v511 = vtanh.pop %v495
        %v512 = vxor.u32 %v425, 2147483648
        %v513 = vxor.u32 %v431, 2147483648
        %v514 = vxor.u32 %v437, 2147483648
        %v515 = vxor.u32 %v443, 2147483648
        %v516 = vxor.u32 %v449, 2147483648
        %v517 = vxor.u32 %v455, 2147483648
        %v518 = vxor.u32 %v461, 2147483648
        %v519 = vxor.u32 %v467, 2147483648
        %v520 = vxor.u32 %v473, 2147483648
        %v521 = vxor.u32 %v479, 2147483648
        %v522 = vxor.u32 %v485, 2147483648
        %v523 = vxor.u32 %v491, 2147483648
        %v524 = vxor.u32 %v497, 2147483648
        %v525 = vmul.f32 %v512, 1.442695
        %v526 = vpow.pop %v525
        %v527 = vmul.f32 %v513, 1.442695
        %v528 = vpow.pop %v527
        %v529 = vmul.f32 %v514, 1.442695
        %v530 = vpow.pop %v529
        %v531 = vmul.f32 %v515, 1.442695
        %v532 = vpow.pop %v531
        %v533 = vmul.f32 %v516, 1.442695
        %v534 = vpow.pop %v533
        %v535 = vmul.f32 %v517, 1.442695
        %v536 = vpow.pop %v535
        %v537 = vmul.f32 %v518, 1.442695
        %v538 = vpow.pop %v537
        %v539 = vmul.f32 %v519, 1.442695
        %v540 = vpow.pop %v539
        %v541 = vmul.f32 %v520, 1.442695
        %v542 = vpow.pop %v541
        %v543 = vmul.f32 %v521, 1.442695
        %v544 = vpow.pop %v543
        %v545 = vmul.f32 %v522, 1.442695
        %v546 = vpow.pop %v545
        %v547 = vmul.f32 %v523, 1.442695
        %v548 = vpow.pop %v547
        %v549 = vmul.f32 %v524, 1.442695
        %v550 = vpow.pop %v549
        %v551 = vadd.f32 %v526, 1.0
        %v552 = vadd.f32 %v528, 1.0
        %v553 = vadd.f32 %v530, 1.0
        %v554 = vadd.f32 %v532, 1.0
        %v555 = vadd.f32 %v534, 1.0
        %v556 = vadd.f32 %v536, 1.0
        %v557 = vadd.f32 %v538, 1.0
        %v558 = vadd.f32 %v540, 1.0
        %v559 = vadd.f32 %v542, 1.0
        %v560 = vadd.f32 %v544, 1.0
        %v561 = vadd.f32 %v546, 1.0
        %v562 = vadd.f32 %v548, 1.0
        %v563 = vadd.f32 %v550, 1.0
        %v564 = vrcp.pop %v551
        %v565 = vmul.f32 1.0, %v564
        %v566 = vrcp.pop %v552
        %v567 = vmul.f32 1.0, %v566
        %v568 = vrcp.pop %v553
        %v569 = vmul.f32 1.0, %v568
        %v570 = vrcp.pop %v554
        %v571 = vmul.f32 1.0, %v570
        %v572 = vrcp.pop %v555
        %v573 = vmul.f32 1.0, %v572
        %v574 = vrcp.pop %v556
        %v575 = vmul.f32 1.0, %v574
        %v576 = vrcp.pop %v557
        %v577 = vmul.f32 1.0, %v576
        %v578 = vrcp.pop %v558
        %v579 = vmul.f32 1.0, %v578
        %v580 = vrcp.pop %v559
        %v581 = vmul.f32 1.0, %v580
        %v582 = vrcp.pop %v560
        %v583 = vmul.f32 1.0, %v582
        %v584 = vrcp.pop %v561
        %v585 = vmul.f32 1.0, %v584
        %v586 = vrcp.pop %v562
        %v587 = vmul.f32 1.0, %v586
        %v588 = vrcp.pop %v563
        %v589 = vmul.f32 1.0, %v588
        %v590 = vmul.f32 %v499, %v565
        %v591 = vmul.f32 %v500, %v567
        %v592 = vmul.f32 %v501, %v569
        %v593 = vmul.f32 %v502, %v571
        %v594 = vmul.f32 %v503, %v573
        %v595 = vmul.f32 %v504, %v575
        %v596 = vmul.f32 %v505, %v577
        %v597 = vmul.f32 %v506, %v579
        %v598 = vmul.f32 %v507, %v581
        %v599 = vmul.f32 %v508, %v583
        %v600 = vmul.f32 %v509, %v585
        %v601 = vmul.f32 %v510, %v587
        %v602 = vmul.f32 %v511, %v589
        %v603 = vld [vmem:[%s3] sm:$0xff]
        %v604 = vld [vmem:[%s3 + $0x8] sm:$0xff]
        %v605 = vld [vmem:[%s3 + $0x10] sm:$0xff]
        %v606 = vld [vmem:[%s3 + $0x18] sm:$0xff]
        %v607 = vld [vmem:[%s3 + $0x20] sm:$0xff]
        %v608 = vld [vmem:[%s3 + $0x28] sm:$0xff]
        %v609 = vld [vmem:[%s3 + $0x30] sm:$0xff]
        %v610 = vld [vmem:[%s3 + $0x38] sm:$0xff]
        %v611 = vld [vmem:[%s3 + $0x40] sm:$0xff]
        %v612 = vld [vmem:[%s3 + $0x48] sm:$0xff]
        %v613 = vld [vmem:[%s3 + $0x50] sm:$0xff]
        %v614 = vld [vmem:[%s3 + $0x58] sm:$0xff]
        %v615 = vld [vmem:[%s3 + $0x60] sm:$0xff]
        %v616 = vld [vmem:[%s3 + $0x68] sm:$0xff]
        %v617 = vld [vmem:[%s3 + $0x70] sm:$0xff]
        %v618 = vld [vmem:[%s3 + $0x78] sm:$0xff]
        %v619 = vld [vmem:[%s4] sm:$0x1]
        %v621 = vlaneseq
        %v622 = vshrl.u32 %v621, 7
        %v623 = vsub.s32 0, %v622
        %v624 = vrot.slane %v619, %v623
        %626 = vmatprep.subr.mxu0 0.0
        %627 = vmatpush1.msra.mxu0 %v603
        %628 = vmatprep.subr.mxu0 0.0
        %629 = vmatpush1.msra.mxu0 %v604
        %630 = vmatprep.subr.mxu0 0.0
        %631 = vmatpush1.msra.mxu0 %v605
        %632 = vmatprep.subr.mxu0 0.0
        %633 = vmatpush1.msra.mxu0 %v606
        %634 = vmatprep.subr.mxu0 0.0
        %635 = vmatpush1.msra.mxu0 %v607
        %636 = vmatprep.subr.mxu0 0.0
        %637 = vmatpush1.msra.mxu0 %v608
        %638 = vmatprep.subr.mxu0 0.0
        %639 = vmatpush1.msra.mxu0 %v609
        %640 = vmatprep.subr.mxu0 0.0
        %641 = vmatpush1.msra.mxu0 %v610
        %642 = vmatprep.subr.mxu0 0.0
        %643 = vmatpush1.msra.mxu0 %v611
        %644 = vmatprep.subr.mxu0 0.0
        %645 = vmatpush1.msra.mxu0 %v612
        %646 = vmatprep.subr.mxu0 0.0
        %647 = vmatpush1.msra.mxu0 %v613
        %648 = vmatprep.subr.mxu0 0.0
        %649 = vmatpush1.msra.mxu0 %v614
        %650 = vmatprep.subr.mxu0 0.0
        %651 = vmatpush1.msra.mxu0 %v615
        %652 = vmatprep.subr.mxu0 0.0
        %653 = vmatpush1.msra.mxu0 %v616
        %654 = vmatprep.subr.mxu0 0.0
        %655 = vmatpush1.msra.mxu0 %v617
        %656 = vmatprep.subr.mxu0 0.0
        %657 = vmatpush1.msra.mxu0 %v618
        %658 = vmatprep.subr.mxu0 0.0
        %659 = vmatpush1.msra.mxu0 0.0
        %660 = vmatprep.subr.mxu0 0.0
        %661 = vmatpush1.msra.mxu0 0.0
        %662 = vmatprep.subr.mxu0 0.0
        %663 = vmatpush1.msra.mxu0 0.0
        %664 = vmatprep.subr.mxu0 0.0
        %665 = vmatpush1.msra.mxu0 0.0
        %666 = vmatprep.subr.mxu0 0.0
        %667 = vmatpush1.msra.mxu0 0.0
        %668 = vmatprep.subr.mxu0 0.0
        %669 = vmatpush1.msra.mxu0 0.0
        %670 = vmatprep.subr.mxu0 0.0
        %671 = vmatpush1.msra.mxu0 0.0
        %672 = vmatprep.subr.mxu0 0.0
        %673 = vmatpush1.msra.mxu0 0.0
        %674 = vmatprep.subr.mxu0 0.0
        %675 = vmatpush1.msra.mxu0 0.0
        %676 = vmatprep.subr.mxu0 0.0
        %677 = vmatpush1.msra.mxu0 0.0
        %678 = vmatprep.subr.mxu0 0.0
        %679 = vmatpush1.msra.mxu0 0.0
        %680 = vmatprep.subr.mxu0 0.0
        %681 = vmatpush1.msra.mxu0 0.0
        %682 = vmatprep.subr.mxu0 0.0
        %683 = vmatpush1.msra.mxu0 0.0
        %684 = vmatprep.subr.mxu0 0.0
        %685 = vmatpush1.msra.mxu0 0.0
        %686 = vmatprep.subr.mxu0 0.0
        %687 = vmatpush1.msra.mxu0 0.0
        %688 = vmatprep.subr.mxu0 0.0
        %689 = vmatpush1.msra.mxu0 0.0
        %690 = vmatprep.mubr.f32.mxu0 0.0
        %691 = vmatmul.mubr.f32.gmra.mrb[0].mxu0 %v590
        %v692 = vpop.f32.mrb[0].mxu0
        %v693 = vadd.f32 %v624, %v692
        %v694 = vpop.f32.mrb[0].mxu0
        %695 = vmatprep.mubr.f32.mxu0 0.0
        %696 = vmatmul.mubr.f32.gmra.mrb[0].mxu0 %v591
        %v697 = vpop.f32.mrb[0].mxu0
        %v698 = vadd.f32 %v624, %v697
        %v699 = vpop.f32.mrb[0].mxu0
        %700 = vmatprep.mubr.f32.mxu0 0.0
        %701 = vmatmul.mubr.f32.gmra.mrb[0].mxu0 %v592
        %v702 = vpop.f32.mrb[0].mxu0
        %v703 = vadd.f32 %v624, %v702
        %v704 = vpop.f32.mrb[0].mxu0
        %705 = vmatprep.mubr.f32.mxu0 0.0
        %706 = vmatmul.mubr.f32.gmra.mrb[0].mxu0 %v593
        %v707 = vpop.f32.mrb[0].mxu0
        %v708 = vadd.f32 %v624, %v707
        %v709 = vpop.f32.mrb[0].mxu0
        %710 = vmatprep.mubr.f32.mxu0 0.0
        %711 = vmatmul.mubr.f32.gmra.mrb[0].mxu0 %v594
        %v712 = vpop.f32.mrb[0].mxu0
        %v713 = vadd.f32 %v624, %v712
        %v714 = vpop.f32.mrb[0].mxu0
        %715 = vmatprep.mubr.f32.mxu0 0.0
        %716 = vmatmul.mubr.f32.gmra.mrb[0].mxu0 %v595
        %v717 = vpop.f32.mrb[0].mxu0
        %v718 = vadd.f32 %v624, %v717
        %v719 = vpop.f32.mrb[0].mxu0
        %720 = vmatprep.mubr.f32.mxu0 0.0
        %721 = vmatmul.mubr.f32.gmra.mrb[0].mxu0 %v596
        %v722 = vpop.f32.mrb[0].mxu0
        %v723 = vadd.f32 %v624, %v722
        %v724 = vpop.f32.mrb[0].mxu0
        %725 = vmatprep.mubr.f32.mxu0 0.0
        %726 = vmatmul.mubr.f32.gmra.mrb[0].mxu0 %v597
        %v727 = vpop.f32.mrb[0].mxu0
        %v728 = vadd.f32 %v624, %v727
        %v729 = vpop.f32.mrb[0].mxu0
        %730 = vmatprep.mubr.f32.mxu0 0.0
        %731 = vmatmul.mubr.f32.gmra.mrb[0].mxu0 %v598
        %v732 = vpop.f32.mrb[0].mxu0
        %v733 = vadd.f32 %v624, %v732
        %v734 = vpop.f32.mrb[0].mxu0
        %735 = vmatprep.mubr.f32.mxu0 0.0
        %736 = vmatmul.mubr.f32.gmra.mrb[0].mxu0 %v599
        %v737 = vpop.f32.mrb[0].mxu0
        %v738 = vadd.f32 %v624, %v737
        %v739 = vpop.f32.mrb[0].mxu0
        %740 = vmatprep.mubr.f32.mxu0 0.0
        %741 = vmatmul.mubr.f32.gmra.mrb[0].mxu0 %v600
        %v742 = vpop.f32.mrb[0].mxu0
        %v743 = vadd.f32 %v624, %v742
        %v744 = vpop.f32.mrb[0].mxu0
        %745 = vmatprep.mubr.f32.mxu0 0.0
        %746 = vmatmul.mubr.f32.gmra.mrb[0].mxu0 %v601
        %v747 = vpop.f32.mrb[0].mxu0
        %v748 = vadd.f32 %v624, %v747
        %v749 = vpop.f32.mrb[0].mxu0
        %750 = vmatprep.mubr.f32.mxu0 0.0
        %751 = vmatmul.mubr.f32.gmra.mrb[0].mxu0 %v602
        %v752 = vpop.f32.mrb[0].mxu0
        %v753 = vadd.f32 %v624, %v752
        %v754 = vpop.f32.mrb[0].mxu0
        %755 = vdwg.mxu0
        %756 = vst [vmem:[%s231] sm:$0xff] %v693
        %757 = vst [vmem:[%s231 + $0x8] sm:$0xff] %v698
        %758 = vst [vmem:[%s231 + $0x10] sm:$0xff] %v703
        %759 = vst [vmem:[%s231 + $0x18] sm:$0xff] %v708
        %760 = vst [vmem:[%s231 + $0x20] sm:$0xff] %v713
        %761 = vst [vmem:[%s231 + $0x28] sm:$0xff] %v718
        %762 = vst [vmem:[%s231 + $0x30] sm:$0xff] %v723
        %763 = vst [vmem:[%s231 + $0x38] sm:$0xff] %v728
        %764 = vst [vmem:[%s231 + $0x40] sm:$0xff] %v733
        %765 = vst [vmem:[%s231 + $0x48] sm:$0xff] %v738
        %766 = vst [vmem:[%s231 + $0x50] sm:$0xff] %v743
        %767 = vst [vmem:[%s231 + $0x58] sm:$0xff] %v748
        %768 = vst [vmem:[%s231 + $0x60] sm:$0xff] %v753
        %s769 = sand.u32 %s134, 1
        %s770 = sand.u32 %s134, 1
        %s771 = smul.addr %s770, 104
        %s772 = scalar_lea.vmem [#allocation2], %s771
        // Predicated region
        $region41: #{_attn_scores.1} parent=39 // pred_check
          %p773 = pneg %p144
        $region42: #{_attn_scores.1} parent=39 // pred_check_branch
          %775 = sbr.rel (%p773) target = $region44
        $region43: #{_attn_scores.1} parent=39 // pred_region
          %s776 = smul.u32 13, %s16
          %s777 = ssub.s32 25, %s776
          %p778 = scmp.lt.s32.totalorder %s777, 13
          %s779 = scalar_select %p778, %s777, 13
          %s780 = smul.u32 128, %s779
          %p781 = scmp.ne.s32.totalorder 0, %s780
          %s782 = smul.addr %s776, 8
          %s783 = scalar_lea.vmem %s5, %s782
          // Predicated region
          $region45: #{_attn_scores.1} parent=43 // pred_check
            %p784 = pneg %p781
          $region46: #{_attn_scores.1} parent=43 // pred_check_branch
            %786 = sbr.rel (%p784) target = $region48
          $region47: #{_attn_scores.1} parent=43 // pred_region
            // Predicated region
            $region49: #{_attn_scores.1} parent=47 // pred_check
              _
            $region50: #{_attn_scores.1} parent=47 // pred_check_branch
              %788 = sbr.rel (0) target = $region52
            $region51: #{_attn_scores.1} parent=47 // pred_region
              // Predicated region
              $region71: #{_attn_scores.1} parent=51 // pred_check
                _
              $region72: #{_attn_scores.1} parent=51 // pred_check_branch
                %862 = sbr.rel (0) target = $region74
              $region73: #{_attn_scores.1} parent=51 // pred_region
                %s863 = sdiv.u32.pop %s779, 13
                %s864 = srem.u32.pop %s779, 13
                // While loop
                $region75: #{_attn_scores.1} parent=73 // loop_pre_header
                  _
                $region76: #{_attn_scores.1} parent=73 // loop_header
                  %s866 = sphi 0, %s868
                  %p867 = scmp.ge.s32.totalorder %s866, %s863
                  %s871 = sphi 0, %s902
                  %s872 = sphi %s772, %s905
                  %s873 = sphi %s783, %s906
                $region77: #{_attn_scores.1} parent=73 // loop_header_branch
                  %870 = sbr.rel (%p867) target = $region81
                $region78: #{_attn_scores.1} parent=73 // loop_body
                  %v874 = vld [vmem:[%s872] sm:$0xff]
                  %875 = vst [vmem:[%s873] sm:$0xff] %v874
                  %v876 = vld [vmem:[%s872 + $0x8] sm:$0xff]
                  %877 = vst [vmem:[%s873 + $0x8] sm:$0xff] %v876
                  %v878 = vld [vmem:[%s872 + $0x10] sm:$0xff]
                  %879 = vst [vmem:[%s873 + $0x10] sm:$0xff] %v878
                  %v880 = vld [vmem:[%s872 + $0x18] sm:$0xff]
                  %881 = vst [vmem:[%s873 + $0x18] sm:$0xff] %v880
                  %v882 = vld [vmem:[%s872 + $0x20] sm:$0xff]
                  %883 = vst [vmem:[%s873 + $0x20] sm:$0xff] %v882
                  %v884 = vld [vmem:[%s872 + $0x28] sm:$0xff]
                  %885 = vst [vmem:[%s873 + $0x28] sm:$0xff] %v884
                  %v886 = vld [vmem:[%s872 + $0x30] sm:$0xff]
                  %887 = vst [vmem:[%s873 + $0x30] sm:$0xff] %v886
                  %v888 = vld [vmem:[%s872 + $0x38] sm:$0xff]
                  %889 = vst [vmem:[%s873 + $0x38] sm:$0xff] %v888
                  %v890 = vld [vmem:[%s872 + $0x40] sm:$0xff]
                  %891 = vst [vmem:[%s873 + $0x40] sm:$0xff] %v890
                  %v892 = vld [vmem:[%s872 + $0x48] sm:$0xff]
                  %893 = vst [vmem:[%s873 + $0x48] sm:$0xff] %v892
                  %v894 = vld [vmem:[%s872 + $0x50] sm:$0xff]
                  %895 = vst [vmem:[%s873 + $0x50] sm:$0xff] %v894
                  %v896 = vld [vmem:[%s872 + $0x58] sm:$0xff]
                  %897 = vst [vmem:[%s873 + $0x58] sm:$0xff] %v896
                  %v898 = vld [vmem:[%s872 + $0x60] sm:$0xff]
                  %899 = vst [vmem:[%s873 + $0x60] sm:$0xff] %v898
                  %s900 = sadd.s32 1, %s871
                  %p901 = scmp.ge.s32.totalorder %s900, %s863
                  %s902 = scalar_select %p901, 0, %s900
                  %s903 = smul.u32 %s902, 104
                  %s904 = smul.u32 %s902, 104
                  %s905 = scalar_lea.vmem %s772, %s903 [#allocation2]
                  %s906 = scalar_lea.vmem %s783, %s904
                $region79: #{_attn_scores.1} parent=73 // loop_footer
                  %s868 = sadd.s32 %s866, 1
                $region80: #{_attn_scores.1} parent=73 // loop_footer_branch
                  %865 = sbr.rel target = $region76
                $region81: #{_attn_scores.1} parent=73 // loop_exit
                  _
                %s907 = sdiv.u32.pop %s779, 13
                %s908 = srem.u32.pop %s779, 13
                %s909 = smul.u32 %s907, 13
                %s910 = smul.u32 8, %s909
                %s911 = scalar_lea.vmem %s772, %s910 [#allocation2]
                %s912 = smul.u32 8, %s909
                %s913 = scalar_lea.vmem %s783, %s912
                // While loop
                $region82: #{_attn_scores.1} parent=73 // loop_pre_header
                  _
                $region83: #{_attn_scores.1} parent=73 // loop_header
                  %s915 = sphi 0, %s917
                  %p916 = scmp.ge.s32.totalorder %s915, %s908
                  %s920 = sphi 0, %s927
                  %s921 = sphi %s911, %s930
                  %s922 = sphi %s913, %s931
                $region84: #{_attn_scores.1} parent=73 // loop_header_branch
                  %919 = sbr.rel (%p916) target = $region88
                $region85: #{_attn_scores.1} parent=73 // loop_body
                  %v923 = vld [vmem:[%s921] sm:$0xff]
                  %924 = vst [vmem:[%s922] sm:$0xff] %v923
                  %s925 = sadd.s32 1, %s920
                  %p926 = scmp.ge.s32.totalorder %s925, %s908
                  %s927 = scalar_select %p926, 0, %s925
                  %s928 = smul.u32 %s927, 8
                  %s929 = smul.u32 %s927, 8
                  %s930 = scalar_lea.vmem %s911, %s928 [#allocation2]
                  %s931 = scalar_lea.vmem %s913, %s929
                $region86: #{_attn_scores.1} parent=73 // loop_footer
                  %s917 = sadd.s32 %s915, 1
                $region87: #{_attn_scores.1} parent=73 // loop_footer_branch
                  %914 = sbr.rel target = $region83
                $region88: #{_attn_scores.1} parent=73 // loop_exit
                  _
              $region74: #{_attn_scores.1} parent=51 // pred_fallthru
                _
              // Predicated region
              $region89: #{_attn_scores.1} parent=51 // pred_check
                _
              $region90: #{_attn_scores.1} parent=51 // pred_check_branch
                %933 = sbr.rel target = $region92
              $region91: #{_attn_scores.1} parent=51 // pred_region
                _
              $region92: #{_attn_scores.1} parent=51 // pred_fallthru
                _
            $region52: #{_attn_scores.1} parent=47 // pred_fallthru
              _
            // Predicated region
            $region53: #{_attn_scores.1} parent=47 // pred_check
              _
            $region54: #{_attn_scores.1} parent=47 // pred_check_branch
              %790 = sbr.rel target = $region56
            $region55: #{_attn_scores.1} parent=47 // pred_region
              %s792 = sdiv.u32.pop %s779, 13
              %s793 = srem.u32.pop %s779, 13
              // While loop
              $region57: #{_attn_scores.1} parent=55 // loop_pre_header
                _
              $region58: #{_attn_scores.1} parent=55 // loop_header
                %s795 = sphi 0, %s797
                %p796 = scmp.ge.s32.totalorder %s795, %s792
                %s800 = sphi 0, %s831
                %s801 = sphi %s772, %s834
                %s802 = sphi %s783, %s835
              $region59: #{_attn_scores.1} parent=55 // loop_header_branch
                %799 = sbr.rel (%p796) target = $region63
              $region60: #{_attn_scores.1} parent=55 // loop_body
                %v803 = vld [vmem:[%s801] sm:$0xff]
                %804 = vst [vmem:[%s802] sm:$0xff] %v803
                %v805 = vld [vmem:[%s801 + $0x8] sm:$0xff]
                %806 = vst [vmem:[%s802 + $0x8] sm:$0xff] %v805
                %v807 = vld [vmem:[%s801 + $0x10] sm:$0xff]
                %808 = vst [vmem:[%s802 + $0x10] sm:$0xff] %v807
                %v809 = vld [vmem:[%s801 + $0x18] sm:$0xff]
                %810 = vst [vmem:[%s802 + $0x18] sm:$0xff] %v809
                %v811 = vld [vmem:[%s801 + $0x20] sm:$0xff]
                %812 = vst [vmem:[%s802 + $0x20] sm:$0xff] %v811
                %v813 = vld [vmem:[%s801 + $0x28] sm:$0xff]
                %814 = vst [vmem:[%s802 + $0x28] sm:$0xff] %v813
                %v815 = vld [vmem:[%s801 + $0x30] sm:$0xff]
                %816 = vst [vmem:[%s802 + $0x30] sm:$0xff] %v815
                %v817 = vld [vmem:[%s801 + $0x38] sm:$0xff]
                %818 = vst [vmem:[%s802 + $0x38] sm:$0xff] %v817
                %v819 = vld [vmem:[%s801 + $0x40] sm:$0xff]
                %820 = vst [vmem:[%s802 + $0x40] sm:$0xff] %v819
                %v821 = vld [vmem:[%s801 + $0x48] sm:$0xff]
                %822 = vst [vmem:[%s802 + $0x48] sm:$0xff] %v821
                %v823 = vld [vmem:[%s801 + $0x50] sm:$0xff]
                %824 = vst [vmem:[%s802 + $0x50] sm:$0xff] %v823
                %v825 = vld [vmem:[%s801 + $0x58] sm:$0xff]
                %826 = vst [vmem:[%s802 + $0x58] sm:$0xff] %v825
                %v827 = vld [vmem:[%s801 + $0x60] sm:$0xff]
                %828 = vst [vmem:[%s802 + $0x60] sm:$0xff] %v827
                %s829 = sadd.s32 1, %s800
                %p830 = scmp.ge.s32.totalorder %s829, %s792
                %s831 = scalar_select %p830, 0, %s829
                %s832 = smul.u32 %s831, 104
                %s833 = smul.u32 %s831, 104
                %s834 = scalar_lea.vmem %s772, %s832 [#allocation2]
                %s835 = scalar_lea.vmem %s783, %s833
              $region61: #{_attn_scores.1} parent=55 // loop_footer
                %s797 = sadd.s32 %s795, 1
              $region62: #{_attn_scores.1} parent=55 // loop_footer_branch
                %794 = sbr.rel target = $region58
              $region63: #{_attn_scores.1} parent=55 // loop_exit
                _
              %s836 = sdiv.u32.pop %s779, 13
              %s837 = srem.u32.pop %s779, 13
              %s838 = smul.u32 %s836, 13
              %s839 = smul.u32 8, %s838
              %s840 = scalar_lea.vmem %s772, %s839 [#allocation2]
              %s841 = smul.u32 8, %s838
              %s842 = scalar_lea.vmem %s783, %s841
              // While loop
              $region64: #{_attn_scores.1} parent=55 // loop_pre_header
                _
              $region65: #{_attn_scores.1} parent=55 // loop_header
                %s844 = sphi 0, %s846
                %p845 = scmp.ge.s32.totalorder %s844, %s837
                %s849 = sphi 0, %s856
                %s850 = sphi %s840, %s859
                %s851 = sphi %s842, %s860
              $region66: #{_attn_scores.1} parent=55 // loop_header_branch
                %848 = sbr.rel (%p845) target = $region70
              $region67: #{_attn_scores.1} parent=55 // loop_body
                %v852 = vld [vmem:[%s850] sm:$0xff]
                %853 = vst [vmem:[%s851] sm:$0xff] %v852
                %s854 = sadd.s32 1, %s849
                %p855 = scmp.ge.s32.totalorder %s854, %s837
                %s856 = scalar_select %p855, 0, %s854
                %s857 = smul.u32 %s856, 8
                %s858 = smul.u32 %s856, 8
                %s859 = scalar_lea.vmem %s840, %s857 [#allocation2]
                %s860 = scalar_lea.vmem %s842, %s858
              $region68: #{_attn_scores.1} parent=55 // loop_footer
                %s846 = sadd.s32 %s844, 1
              $region69: #{_attn_scores.1} parent=55 // loop_footer_branch
                %843 = sbr.rel target = $region65
              $region70: #{_attn_scores.1} parent=55 // loop_exit
                _
            $region56: #{_attn_scores.1} parent=47 // pred_fallthru
              _
          $region48: #{_attn_scores.1} parent=43 // pred_fallthru
            _
          %934 = vnop
        $region44: #{_attn_scores.1} parent=39 // pred_fallthru
          _
      $region40: #{_attn_scores.1} parent=5 // pred_fallthru
        _
      %p935 = scmp.le.s32.totalorder 2, %s11
      // Predicated region
      $region93: #{_attn_scores.1} parent=5 // pred_check
        %p936 = pneg %p935
      $region94: #{_attn_scores.1} parent=5 // pred_check_branch
        %938 = sbr.rel (%p936) target = $region96
      $region95: #{_attn_scores.1} parent=5 // pred_region
        %s939 = ssub.s32 %s11, 2
        // Predicated region
        $region97: #{_attn_scores.1} parent=95 // pred_check
          %p940 = pneg %p150
        $region98: #{_attn_scores.1} parent=95 // pred_check_branch
          %942 = sbr.rel (%p940) target = $region100
        $region99: #{_attn_scores.1} parent=95 // pred_region
          %s943 = sand.u32 %s135, 1
          %s944 = sand.u32 %s135, 1
          %s945 = smul.addr %s944, 104
          %s946 = scalar_lea.vmem [#allocation2], %s945
        $region100: #{_attn_scores.1} parent=95 // pred_fallthru
          _
      $region96: #{_attn_scores.1} parent=5 // pred_fallthru
        _
    $region6: #{_attn_scores.1} parent=1 // loop_footer
      %s15 = sadd.s32 1, %s11
    $region7: #{_attn_scores.1} parent=1 // loop_footer_branch
      %10 = sbr.rel target = $region3
    $region8: #{_attn_scores.1} parent=1 // loop_exit
      _

</llo_original>
